<compile_context>
chip_gen: v7x
topology: tpu7x:2x2x1
jax: 0.10.0
libtpu: 0.0.40
codegen_flags: <defaults>
</compile_context>

<pallas_src>
import functools

import jax
import jax.numpy as jnp
import numpy as np
from jax.experimental import pallas as pl
from jax.experimental.pallas import tpu as pltpu

BN_EPS = 1e-5
_VMEM_LIMIT = 48 * 1024 * 1024  # > 32 MiB scoped default; headroom on v7x 64 MiB


def _round_up(a, b):
    return (a + b - 1) // b * b


def _pick_m_tile(m):
    """Lane-dense spatial tile: a multiple of 128 lanes, large enough to amortize
    the ~0.35us per-grid-step overhead, small enough to bound VMEM / padding."""
    if m <= 1024:
        return _round_up(m, 128)
    return 512


def _conv_stats_kernel(p_ref, w_ref, h_ref, psum_ref, pssq_ref):
    """Pass 1: h = W @ P on the MXU (f32 accumulate); store h and per-block
    per-channel partial sum / sum-of-squares (conv bias omitted: cancels in BN)."""
    wp = jnp.dot(w_ref[...], p_ref[...], preferred_element_type=jnp.float32)
    h_ref[...] = wp
    psum_ref[...] = jnp.sum(wp, axis=1, keepdims=True)
    pssq_ref[...] = jnp.sum(wp * wp, axis=1, keepdims=True)


def _affine_act_kernel(h_ref, scale_ref, shift_ref, o_ref, *, neg_slope):
    """Pass 2: elementwise BN affine (folded scale/shift) + activation."""
    y = h_ref[...] * scale_ref[...] + shift_ref[...]
    if neg_slope == 0.0:
        o_ref[...] = jnp.maximum(y, 0.0)
    else:
        o_ref[...] = jnp.where(y >= 0.0, y, neg_slope * y)


@functools.partial(jax.jit, static_argnames=("neg_slope",))
def conv2d_norm_act(x, w, b, gamma, beta, *, neg_slope=0.0):
    """conv_2d forward: Conv2d(k, stride 1, VALID) -> batch-norm -> ReLU/LeakyReLU.

    x: (N, Cin, H, W) f32; w: (Cout, Cin, k, k); b/gamma/beta: (Cout,)
    returns (N, Cout, Ho, Wo) f32 with Ho = H-k+1, Wo = W-k+1.
    Note: the conv bias `b` cancels exactly under the following batch norm, so it
    is accepted for interface parity but not used in the computation.
    """
    del b  # provably a no-op in the forward pass (BN removes per-channel shifts)

    N, Cin, H, W = x.shape
    Cout, _, kh, kw = w.shape
    Ho, Wo = H - kh + 1, W - kw + 1
    M = Ho * Wo
    K = Cin * kh * kw

    m_tile = _pick_m_tile(M)
    m_pad = _round_up(M, m_tile)
    n_mt = m_pad // m_tile

    # --- im2col glue (static slices + concat; spatial rides the lane axis) ----
    cols = [x[:, :, dy:dy + Ho, dx:dx + Wo]
            for dy in range(kh) for dx in range(kw)]
    p = jnp.concatenate(cols, axis=1).reshape(N, K, M)
    if m_pad != M:
        p = jnp.pad(p, ((0, 0), (0, 0), (0, m_pad - M)))  # zero cols -> 0 stats
    p = p.astype(jnp.bfloat16)                              # bf16 MXU operand
    # Weight matrix in matching (dy, dx, ci) feature order.
    wm = jnp.transpose(w, (0, 2, 3, 1)).reshape(Cout, K).astype(jnp.bfloat16)

    p_spec = pl.BlockSpec((None, K, m_tile), lambda n, t: (n, 0, t))
    w_spec = pl.BlockSpec((Cout, K), lambda n, t: (0, 0))          # VMEM-resident
    h_spec = pl.BlockSpec((None, Cout, m_tile), lambda n, t: (n, 0, t))
    part_spec = pl.BlockSpec((None, None, Cout, 1), lambda n, t: (n, t, 0, 0))

    # --- pass 1: conv matmul + per-block partial batch statistics -------------
    h, psum, pssq = pl.pallas_call(
        _conv_stats_kernel,
        grid=(N, n_mt),
        in_specs=[p_spec, w_spec],
        out_specs=(h_spec, part_spec, part_spec),
        out_shape=(jax.ShapeDtypeStruct((N, Cout, m_pad), jnp.float32),
                   jax.ShapeDtypeStruct((N, n_mt, Cout, 1), jnp.float32),
                   jax.ShapeDtypeStruct((N, n_mt, Cout, 1), jnp.float32)),
        compiler_params=pltpu.CompilerParams(
            dimension_semantics=("parallel", "parallel"),  # megacore-splittable
            vmem_limit_bytes=_VMEM_LIMIT),
    )(p, wm)

    # --- fold BN (training-mode batch stats, biased var) into scale/shift -----
    # TODO(synk): TransNorm2d's domain-adaptive channel attention is not defined
    # in the spec; standard BatchNorm2d training-mode statistics are used.
    count = jnp.float32(N * M)                      # true count (padding excluded)
    sum_wp = jnp.sum(psum, axis=(0, 1))[:, 0]       # (Cout,)
    ssq_wp = jnp.sum(pssq, axis=(0, 1))[:, 0]
    mean_wp = sum_wp / count
    var = jnp.maximum(ssq_wp / count - mean_wp * mean_wp, 0.0)   # biased var
    scale = gamma * jax.lax.rsqrt(var + BN_EPS)
    shift = beta - mean_wp * scale

    # --- pass 2: streamed elementwise affine + activation (lane-dense) --------
    vec_spec = pl.BlockSpec((Cout, 1), lambda n, t: (0, 0))
    out = pl.pallas_call(
        functools.partial(_affine_act_kernel, neg_slope=neg_slope),
        grid=(N, n_mt),
        in_specs=[h_spec, vec_spec, vec_spec],
        out_specs=h_spec,
        out_shape=jax.ShapeDtypeStruct((N, Cout, m_pad), jnp.float32),
        compiler_params=pltpu.CompilerParams(
            dimension_semantics=("parallel", "parallel"),
            vmem_limit_bytes=_VMEM_LIMIT),
    )(h, scale.reshape(Cout, 1), shift.reshape(Cout, 1))

    # Drop lane padding, contiguous reshape back to NCHW (no transpose).
    return out[:, :, :M].reshape(N, Cout, Ho, Wo)


def _reference(x, w, b, gamma, beta, neg_slope=0.0):
    """Pure-JAX reference with identical semantics."""
    y = jax.lax.conv_general_dilated(
        x, w, window_strides=(1, 1), padding="VALID",
        dimension_numbers=("NCHW", "OIHW", "NCHW"),
        precision=jax.lax.Precision.HIGHEST)
    y = y + b[None, :, None, None]
    mean = jnp.mean(y, axis=(0, 2, 3), keepdims=True)
    var = jnp.mean((y - mean) ** 2, axis=(0, 2, 3), keepdims=True)
    y = (y - mean) * jax.lax.rsqrt(var + BN_EPS)
    y = y * gamma[None, :, None, None] + beta[None, :, None, None]
    return jnp.where(y >= 0.0, y, neg_slope * y)


if __name__ == "__main__":
    # Small shapes consistent with the module: Conv2d input is (N, Cin, H, W).
    N, Cin, Cout, k, H, W = 2, 4, 8, 3, 16, 16

    key = jax.random.PRNGKey(0)
    kx, kw_, kb, kg, kbt = jax.random.split(key, 5)

    def q(v, s):  # snap to multiples of 1/s so the bf16 cast in-kernel is exact
        return jnp.round(v * s) / s

    x = q(jax.random.normal(kx, (N, Cin, H, W), dtype=jnp.float32), 16.0)
    w = q(jax.random.normal(kw_, (Cout, Cin, k, k), dtype=jnp.float32)
          * (1.0 / np.sqrt(Cin * k * k)), 128.0)
    b = q(jax.random.normal(kb, (Cout,), dtype=jnp.float32) * 0.1, 128.0)
    gamma = 1.0 + q(jax.random.normal(kg, (Cout,), dtype=jnp.float32) * 0.1, 128.0)
    beta = q(jax.random.normal(kbt, (Cout,), dtype=jnp.float32) * 0.1, 128.0)

    # activation='relu' variant
    out = jax.block_until_ready(conv2d_norm_act(x, w, b, gamma, beta,
                                                neg_slope=0.0))
    ref = jax.block_until_ready(_reference(x, w, b, gamma, beta, neg_slope=0.0))
    assert out.shape == (N, Cout, H - k + 1, W - k + 1)
    np.testing.assert_allclose(np.asarray(out), np.asarray(ref),
                               rtol=1e-4, atol=1e-4)

    # activation='leakyrelu' variant (negative_slope=0.2)
    out_l = jax.block_until_ready(conv2d_norm_act(x, w, b, gamma, beta,
                                                  neg_slope=0.2))
    ref_l = jax.block_until_ready(_reference(x, w, b, gamma, beta,
                                             neg_slope=0.2))
    np.testing.assert_allclose(np.asarray(out_l), np.asarray(ref_l),
                               rtol=1e-4, atol=1e-4)

    print("KERNEL_OK")
</pallas_src>

<mosaic_0001>
module attributes {stable_mosaic.version = 11 : i64} {
  func.func @_conv_stats_kernel(%arg0: i32, %arg1: i32, %arg2: memref<1x36x256xbf16, #tpu.memory_space<vmem>>, %arg3: memref<8x36xbf16, #tpu.memory_space<vmem>>, %arg4: memref<1x8x256xf32, #tpu.memory_space<vmem>>, %arg5: memref<1x1x8x1xf32, #tpu.memory_space<vmem>>, %arg6: memref<1x1x8x1xf32, #tpu.memory_space<vmem>>) attributes {dimension_semantics = [#tpu.dimension_semantics<parallel>, #tpu.dimension_semantics<parallel>], iteration_bounds = array<i64: 2, 1>, scalar_prefetch = 0 : i64, scratch_operands = 0 : i64, tpu.core_type = #tpu.core_type<tc>, window_params = [{transform_indices = @transform_0, window_bounds = array<i64: 1, 36, 256>}, {pipeline_mode = #tpu.pipeline_mode<synchronous>, transform_indices = @transform_1, window_bounds = array<i64: 8, 36>}, {transform_indices = @transform_2, window_bounds = array<i64: 1, 8, 256>}, {transform_indices = @transform_3, window_bounds = array<i64: 1, 1, 8, 1>}, {transform_indices = @transform_4, window_bounds = array<i64: 1, 1, 8, 1>}]} {
    %c0 = arith.constant 0 : index
    %c0_0 = arith.constant 0 : index
    %0 = vector.load %arg3[%c0, %c0_0] : memref<8x36xbf16, #tpu.memory_space<vmem>>, vector<8x36xbf16>
    %c0_1 = arith.constant 0 : index
    %c0_2 = arith.constant 0 : index
    %c0_3 = arith.constant 0 : index
    %1 = vector.load %arg2[%c0_1, %c0_2, %c0_3] : memref<1x36x256xbf16, #tpu.memory_space<vmem>>, vector<1x36x256xbf16>
    %2 = vector.shape_cast %1 : vector<1x36x256xbf16> to vector<36x256xbf16>
    %cst = arith.constant dense<0.000000e+00> : vector<8x256xf32>
    %3 = tpu.matmul %0, %2, %cst {dimension_numbers = #tpu.dot_dimension_numbers<[1], [0], [0], [1], [0, 0, 1, 1], [], []>} : vector<8x36xbf16>, vector<36x256xbf16>, vector<8x256xf32> -> vector<8x256xf32>
    %c0_4 = arith.constant 0 : index
    %c0_5 = arith.constant 0 : index
    %c0_6 = arith.constant 0 : index
    %4 = vector.load %arg4[%c0_4, %c0_5, %c0_6] : memref<1x8x256xf32, #tpu.memory_space<vmem>>, vector<1x8x256xf32>
    %5 = vector.shape_cast %4 : vector<1x8x256xf32> to vector<8x256xf32>
    %6 = vector.shape_cast %3 : vector<8x256xf32> to vector<1x8x256xf32>
    tpu.vector_store %arg4[%c0_4, %c0_5, %c0_6], %6 {strides = array<i32>} : memref<1x8x256xf32, #tpu.memory_space<vmem>>, vector<1x8x256xf32>,
    %cst_7 = arith.constant dense<0.000000e+00> : vector<8xf32>
    %7 = vector.multi_reduction <add>, %3, %cst_7 [1] : vector<8x256xf32> to vector<8xf32>
    %8 = vector.shape_cast %7 : vector<8xf32> to vector<8x1xf32>
    %c0_8 = arith.constant 0 : index
    %c0_9 = arith.constant 0 : index
    %c0_10 = arith.constant 0 : index
    %c0_11 = arith.constant 0 : index
    %9 = vector.load %arg5[%c0_8, %c0_9, %c0_10, %c0_11] : memref<1x1x8x1xf32, #tpu.memory_space<vmem>>, vector<1x1x8x1xf32>
    %10 = vector.shape_cast %9 : vector<1x1x8x1xf32> to vector<8x1xf32>
    %11 = vector.shape_cast %8 : vector<8x1xf32> to vector<1x1x8x1xf32>
    tpu.vector_store %arg5[%c0_8, %c0_9, %c0_10, %c0_11], %11 {strides = array<i32>} : memref<1x1x8x1xf32, #tpu.memory_space<vmem>>, vector<1x1x8x1xf32>,
    %12 = arith.mulf %3, %3 : vector<8x256xf32>
    %cst_12 = arith.constant dense<0.000000e+00> : vector<8xf32>
    %13 = vector.multi_reduction <add>, %12, %cst_12 [1] : vector<8x256xf32> to vector<8xf32>
    %14 = vector.shape_cast %13 : vector<8xf32> to vector<8x1xf32>
    %c0_13 = arith.constant 0 : index
    %c0_14 = arith.constant 0 : index
    %c0_15 = arith.constant 0 : index
    %c0_16 = arith.constant 0 : index
    %15 = vector.load %arg6[%c0_13, %c0_14, %c0_15, %c0_16] : memref<1x1x8x1xf32, #tpu.memory_space<vmem>>, vector<1x1x8x1xf32>
    %16 = vector.shape_cast %15 : vector<1x1x8x1xf32> to vector<8x1xf32>
    %17 = vector.shape_cast %14 : vector<8x1xf32> to vector<1x1x8x1xf32>
    tpu.vector_store %arg6[%c0_13, %c0_14, %c0_15, %c0_16], %17 {strides = array<i32>} : memref<1x1x8x1xf32, #tpu.memory_space<vmem>>, vector<1x1x8x1xf32>,
    return
  }
  func.func @transform_0(%arg0: i32, %arg1: i32) -> (i32, i32, i32) {
    %c0_i32 = arith.constant 0 : i32
    %c0_i32_0 = arith.constant 0 : i32
    return %arg0, %c0_i32, %arg1 : i32, i32, i32
  }
  func.func @transform_1(%arg0: i32, %arg1: i32) -> (i32, i32) {
    %c0_i32 = arith.constant 0 : i32
    %c0_i32_0 = arith.constant 0 : i32
    %c0_i32_1 = arith.constant 0 : i32
    return %c0_i32, %c0_i32_0 : i32, i32
  }
  func.func @transform_2(%arg0: i32, %arg1: i32) -> (i32, i32, i32) {
    %c0_i32 = arith.constant 0 : i32
    %c0_i32_0 = arith.constant 0 : i32
    return %arg0, %c0_i32, %arg1 : i32, i32, i32
  }
  func.func @transform_3(%arg0: i32, %arg1: i32) -> (i32, i32, i32, i32) {
    %c0_i32 = arith.constant 0 : i32
    %c0_i32_0 = arith.constant 0 : i32
    %c0_i32_1 = arith.constant 0 : i32
    return %arg0, %arg1, %c0_i32, %c0_i32_0 : i32, i32, i32, i32
  }
  func.func @transform_4(%arg0: i32, %arg1: i32) -> (i32, i32, i32, i32) {
    %c0_i32 = arith.constant 0 : i32
    %c0_i32_0 = arith.constant 0 : i32
    %c0_i32_1 = arith.constant 0 : i32
    return %arg0, %arg1, %c0_i32, %c0_i32_0 : i32, i32, i32, i32
  }
}

module attributes {stable_mosaic.version = 11 : i64} {
  func.func @_affine_act_kernel(%arg0: i32, %arg1: i32, %arg2: memref<1x8x256xf32, #tpu.memory_space<vmem>>, %arg3: memref<8x1xf32, #tpu.memory_space<vmem>>, %arg4: memref<8x1xf32, #tpu.memory_space<vmem>>, %arg5: memref<1x8x256xf32, #tpu.memory_space<vmem>>) attributes {dimension_semantics = [#tpu.dimension_semantics<parallel>, #tpu.dimension_semantics<parallel>], iteration_bounds = array<i64: 2, 1>, scalar_prefetch = 0 : i64, scratch_operands = 0 : i64, tpu.core_type = #tpu.core_type<tc>, window_params = [{transform_indices = @transform_0, window_bounds = array<i64: 1, 8, 256>}, {pipeline_mode = #tpu.pipeline_mode<synchronous>, transform_indices = @transform_1, window_bounds = array<i64: 8, 1>}, {pipeline_mode = #tpu.pipeline_mode<synchronous>, transform_indices = @transform_2, window_bounds = array<i64: 8, 1>}, {transform_indices = @transform_3, window_bounds = array<i64: 1, 8, 256>}]} {
    %c0 = arith.constant 0 : index
    %c0_0 = arith.constant 0 : index
    %c0_1 = arith.constant 0 : index
    %0 = vector.load %arg2[%c0, %c0_0, %c0_1] : memref<1x8x256xf32, #tpu.memory_space<vmem>>, vector<1x8x256xf32>
    %1 = vector.shape_cast %0 : vector<1x8x256xf32> to vector<8x256xf32>
    %c0_2 = arith.constant 0 : index
    %c0_3 = arith.constant 0 : index
    %2 = vector.load %arg3[%c0_2, %c0_3] : memref<8x1xf32, #tpu.memory_space<vmem>>, vector<8x1xf32>
    %3 = vector.broadcast %2 : vector<8x1xf32> to vector<8x256xf32>
    %4 = arith.mulf %1, %3 : vector<8x256xf32>
    %c0_4 = arith.constant 0 : index
    %c0_5 = arith.constant 0 : index
    %5 = vector.load %arg4[%c0_4, %c0_5] : memref<8x1xf32, #tpu.memory_space<vmem>>, vector<8x1xf32>
    %6 = vector.broadcast %5 : vector<8x1xf32> to vector<8x256xf32>
    %7 = arith.addf %4, %6 : vector<8x256xf32>
    %cst = arith.constant 0.000000e+00 : f32
    %8 = vector.broadcast %cst : f32 to vector<8x256xf32>
    %9 = arith.maximumf %7, %8 : vector<8x256xf32>
    %c0_6 = arith.constant 0 : index
    %c0_7 = arith.constant 0 : index
    %c0_8 = arith.constant 0 : index
    %10 = vector.load %arg5[%c0_6, %c0_7, %c0_8] : memref<1x8x256xf32, #tpu.memory_space<vmem>>, vector<1x8x256xf32>
    %11 = vector.shape_cast %10 : vector<1x8x256xf32> to vector<8x256xf32>
    %12 = vector.shape_cast %9 : vector<8x256xf32> to vector<1x8x256xf32>
    tpu.vector_store %arg5[%c0_6, %c0_7, %c0_8], %12 {strides = array<i32>} : memref<1x8x256xf32, #tpu.memory_space<vmem>>, vector<1x8x256xf32>,
    return
  }
  func.func @transform_0(%arg0: i32, %arg1: i32) -> (i32, i32, i32) {
    %c0_i32 = arith.constant 0 : i32
    %c0_i32_0 = arith.constant 0 : i32
    return %arg0, %c0_i32, %arg1 : i32, i32, i32
  }
  func.func @transform_1(%arg0: i32, %arg1: i32) -> (i32, i32) {
    %c0_i32 = arith.constant 0 : i32
    %c0_i32_0 = arith.constant 0 : i32
    %c0_i32_1 = arith.constant 0 : i32
    return %c0_i32, %c0_i32_0 : i32, i32
  }
  func.func @transform_2(%arg0: i32, %arg1: i32) -> (i32, i32) {
    %c0_i32 = arith.constant 0 : i32
    %c0_i32_0 = arith.constant 0 : i32
    %c0_i32_1 = arith.constant 0 : i32
    return %c0_i32, %c0_i32_0 : i32, i32
  }
  func.func @transform_3(%arg0: i32, %arg1: i32) -> (i32, i32, i32) {
    %c0_i32 = arith.constant 0 : i32
    %c0_i32_0 = arith.constant 0 : i32
    return %arg0, %c0_i32, %arg1 : i32, i32, i32
  }
}

</mosaic_0001>

<llo_original>
// kernel: conv2d_norm_act.3
$region0: #{conv2d_norm_act.3}
  #allocation0 [shape = 'u32[]', space=smem, size = 0x4, offset = 0x4, fixed_abs, tag = 'smem constant byte address 0x4 - core index']
  #allocation1 [shape = 'u32[144,128]{1,0:T(1,128)}', space=vmem, size = 0x12000, scoped, tag = 'internal scratch']
  %s0 = inlined_call_operand.vmem [shape: f32[2,8,256], index: 0, kind: input, shape index: {}]
  %s1 = inlined_call_operand.vmem [shape: f32[8,1], index: 1, kind: input, shape index: {}]
  %s2 = inlined_call_operand.vmem [shape: f32[8,1], index: 2, kind: input, shape index: {}]
  %s3 = inlined_call_operand.vmem [shape: f32[2,8,256], index: 3, kind: output, shape index: {}]
  %s4 = sld [smem:[#allocation0]]
  $region45: #{conv2d_norm_act.3} parent=0
    _
  %s6 = ssub.s32 1, %s4
  %s7 = scalar_select 0, %s6, %s4
  loop: start=0, step=1, limit=4
  $region2: #{conv2d_norm_act.3} parent=0 // loop_pre_header
    _
  $region3: #{conv2d_norm_act.3} parent=0 // loop_header
    %s9 = sphi 0, %s13
    %p10 = scmp.ge.s32.totalorder %s9, 4
    %s16 = sphi 0, %s28
    %s17 = sphi 0, %s24
    %s18 = sphi 0, %s16
    %s19 = sphi 0, %s17
    %s20 = sphi 0, %s18
    %s21 = sphi 0, %s19
    %s33 = sphi 0, %s35
    %s36 = sphi 0, %s33
    %s37 = sphi 0, %s36
    %s53 = sphi 0, %s37
    %s57 = sphi 0, %s57
    %s59 = sphi 0, %s57
    %s60 = sphi 0, %s59
    %s74 = sphi 0, %s60
    %s78 = sphi 0, %s78
    %s80 = sphi 0, %s78
    %s81 = sphi 0, %s80
    %s95 = sphi 0, %s81
    %s103 = sphi 0, %s105
    %s106 = sphi 0, %s103
    %s107 = sphi 0, %s106
    %s123 = sphi 0, %s107
  $region4: #{conv2d_norm_act.3} parent=0 // loop_header_branch
    %12 = sbr.rel (%p10) target = $region8
  $region5: #{conv2d_norm_act.3} parent=0 // loop_body
    %s14 = ssub.s32 %s9, 1
    %s15 = ssub.s32 %s9, 2
    %s22 = sadd.s32 1, %s17
    %p23 = scmp.ge.s32.totalorder %s22, 1
    %s24 = scalar_select %p23, 0, %s22
    %s25 = sadd.s32 1, %s16
    %s26 = scalar_select %p23, %s25, %s16
    %p27 = scmp.ge.s32.totalorder %s26, 2
    %s28 = scalar_select %p27, 0, %s26
    %s29 = ssub.s32 %s16, %s28
    %s30 = ssub.s32 %s17, %s24
    %s31 = sor.u32 %s29, %s30
    %p32 = scmp.eq.s32.totalorder %s31, 0
    %s34 = sadd.s32 %s33, 1
    %s35 = scalar_select %p32, %s33, %s34
    %p38 = pneg %p32
    %p39 = scmp.eq.s32.totalorder %s9, 1
    %p40 = por %p38, %p39
    %p41 = scmp.ne.s32.totalorder %s33, %s36
    %p42 = scmp.eq.s32.totalorder %s9, 0
    %p43 = por %p41, %p42
    %p44 = scmp.ne.s32.totalorder %s33, %s36
    %p45 = scmp.eq.s32.totalorder %s14, 1
    %p46 = por %p44, %p45
    %p47 = scmp.ne.s32.totalorder %s36, %s37
    %p48 = scmp.eq.s32.totalorder %s14, 0
    %p49 = por %p47, %p48
    %p50 = scmp.ne.s32.totalorder %s36, %s37
    %p51 = scmp.eq.s32.totalorder %s15, 1
    %p52 = por %p50, %p51
    %p54 = scmp.ne.s32.totalorder %s37, %s53
    %p55 = scmp.eq.s32.totalorder %s15, 0
    %p56 = por %p54, %p55
    %s58 = sadd.s32 %s57, 1
    %p61 = scmp.eq.s32.totalorder %s9, 1
    %p62 = scmp.ne.s32.totalorder %s57, %s59
    %p63 = scmp.eq.s32.totalorder %s9, 0
    %p64 = por %p62, %p63
    %p65 = scmp.ne.s32.totalorder %s57, %s59
    %p66 = scmp.eq.s32.totalorder %s14, 1
    %p67 = por %p65, %p66
    %p68 = scmp.ne.s32.totalorder %s59, %s60
    %p69 = scmp.eq.s32.totalorder %s14, 0
    %p70 = por %p68, %p69
    %p71 = scmp.ne.s32.totalorder %s59, %s60
    %p72 = scmp.eq.s32.totalorder %s15, 1
    %p73 = por %p71, %p72
    %p75 = scmp.ne.s32.totalorder %s60, %s74
    %p76 = scmp.eq.s32.totalorder %s15, 0
    %p77 = por %p75, %p76
    %s79 = sadd.s32 %s78, 1
    %p82 = scmp.eq.s32.totalorder %s9, 1
    %p83 = scmp.ne.s32.totalorder %s78, %s80
    %p84 = scmp.eq.s32.totalorder %s9, 0
    %p85 = por %p83, %p84
    %p86 = scmp.ne.s32.totalorder %s78, %s80
    %p87 = scmp.eq.s32.totalorder %s14, 1
    %p88 = por %p86, %p87
    %p89 = scmp.ne.s32.totalorder %s80, %s81
    %p90 = scmp.eq.s32.totalorder %s14, 0
    %p91 = por %p89, %p90
    %p92 = scmp.ne.s32.totalorder %s80, %s81
    %p93 = scmp.eq.s32.totalorder %s15, 1
    %p94 = por %p92, %p93
    %p96 = scmp.ne.s32.totalorder %s81, %s95
    %p97 = scmp.eq.s32.totalorder %s15, 0
    %p98 = por %p96, %p97
    %s99 = ssub.s32 %s16, %s28
    %s100 = ssub.s32 %s17, %s24
    %s101 = sor.u32 %s99, %s100
    %p102 = scmp.eq.s32.totalorder %s101, 0
    %s104 = sadd.s32 %s103, 1
    %s105 = scalar_select %p102, %s103, %s104
    %p108 = pneg %p102
    %p109 = scmp.eq.s32.totalorder %s9, 1
    %p110 = por %p108, %p109
    %p111 = scmp.ne.s32.totalorder %s103, %s106
    %p112 = scmp.eq.s32.totalorder %s9, 0
    %p113 = por %p111, %p112
    %p114 = scmp.ne.s32.totalorder %s103, %s106
    %p115 = scmp.eq.s32.totalorder %s14, 1
    %p116 = por %p114, %p115
    %p117 = scmp.ne.s32.totalorder %s106, %s107
    %p118 = scmp.eq.s32.totalorder %s14, 0
    %p119 = por %p117, %p118
    %p120 = scmp.ne.s32.totalorder %s106, %s107
    %p121 = scmp.eq.s32.totalorder %s15, 1
    %p122 = por %p120, %p121
    %p124 = scmp.ne.s32.totalorder %s107, %s123
    %p125 = scmp.eq.s32.totalorder %s15, 0
    %p126 = por %p124, %p125
    %p127 = scmp.le.s32.totalorder 1, %s9
    %p128 = scmp.lt.s32.totalorder %s9, 3
    %p129 = pnand %p127, %p128
    %p130 = pneg %p129
    // Predicated region
    $region9: #{conv2d_norm_act.3} parent=5 // pred_check
      _
    $region10: #{conv2d_norm_act.3} parent=5 // pred_check_branch
      %132 = sbr.rel (%p129) target = $region12
    $region11: #{conv2d_norm_act.3} parent=5 // pred_region
      %s133 = ssub.s32 %s9, 1
      // Predicated region
      $region13: #{conv2d_norm_act.3} parent=11 // pred_check
        %p134 = pneg %p70
      $region14: #{conv2d_norm_act.3} parent=11 // pred_check_branch
        %136 = sbr.rel (%p134) target = $region16
      $region15: #{conv2d_norm_act.3} parent=11 // pred_region
        _
      $region16: #{conv2d_norm_act.3} parent=11 // pred_fallthru
        _
      // Predicated region
      $region17: #{conv2d_norm_act.3} parent=11 // pred_check
        %p137 = pneg %p91
      $region18: #{conv2d_norm_act.3} parent=11 // pred_check_branch
        %139 = sbr.rel (%p137) target = $region20
      $region19: #{conv2d_norm_act.3} parent=11 // pred_region
        _
      $region20: #{conv2d_norm_act.3} parent=11 // pred_fallthru
        _
    $region12: #{conv2d_norm_act.3} parent=5 // pred_fallthru
      _
    %p140 = scmp.lt.s32.totalorder %s9, 2
    // Predicated region
    $region21: #{conv2d_norm_act.3} parent=5 // pred_check
      %p141 = pneg %p140
    $region22: #{conv2d_norm_act.3} parent=5 // pred_check_branch
      %143 = sbr.rel (%p141) target = $region24
    $region23: #{conv2d_norm_act.3} parent=5 // pred_region
      // Predicated region
      $region25: #{conv2d_norm_act.3} parent=23 // pred_check
        %p144 = pneg %p43
      $region26: #{conv2d_norm_act.3} parent=23 // pred_check_branch
        %146 = sbr.rel (%p144) target = $region28
      $region27: #{conv2d_norm_act.3} parent=23 // pred_region
        %s147 = smul.u32 2, %s17
        %p148 = scmp.lt.s32.totalorder %s16, 1
        %s149 = scalar_select %p148, %s16, 1
        %p150 = scmp.lt.s32.totalorder %s147, 1
        %s151 = scalar_select %p150, %s147, 1
        %s152 = smul.addr %s149, 2
        %s153 = sadd.s32 %s151, %s152
        %s154 = smul.addr %s153, 8
        %s155 = scalar_lea.vmem %s0, %s154
        %s156 = smul.u32 2, %s17
      $region28: #{conv2d_norm_act.3} parent=23 // pred_fallthru
        _
    $region24: #{conv2d_norm_act.3} parent=5 // pred_fallthru
      _
    %p157 = scmp.le.s32.totalorder 1, %s9
    %p158 = scmp.lt.s32.totalorder %s9, 3
    %p159 = pnand %p157, %p158
    %p160 = pneg %p159
    // Predicated region
    $region29: #{conv2d_norm_act.3} parent=5 // pred_check
      _
    $region30: #{conv2d_norm_act.3} parent=5 // pred_check_branch
      %162 = sbr.rel (%p159) target = $region32
    $region31: #{conv2d_norm_act.3} parent=5 // pred_region
      %s163 = ssub.s32 %s9, 1
      %s164 = smul.u32 2, %s19
      %p165 = scmp.lt.s32.totalorder %s18, 1
      %s166 = scalar_select %p165, %s18, 1
      %p167 = scmp.lt.s32.totalorder %s164, 1
      %s168 = scalar_select %p167, %s164, 1
      %s169 = smul.addr %s166, 2
      %s170 = sadd.s32 %s168, %s169
      %s171 = smul.addr %s170, 8
      %s172 = scalar_lea.vmem %s0, %s171
      %p173 = pneg %p49
      %p174 = pneg %p46
      %p175 = pneg %p70
      %p176 = pneg %p67
      %p177 = pneg %p91
      %p178 = pneg %p88
      %p179 = pneg %p119
      %p180 = pneg %p116
      %s181 = smul.u32 2, %s19
      %p182 = scmp.lt.s32.totalorder %s18, 1
      %s183 = scalar_select %p182, %s18, 1
      %p184 = scmp.lt.s32.totalorder %s181, 1
      %s185 = scalar_select %p184, %s181, 1
      %s186 = smul.addr %s183, 2
      %s187 = sadd.s32 %s185, %s186
      %s188 = smul.addr %s187, 8
      %s189 = scalar_lea.vmem %s3, %s188
      %s190 = smul.u32 2, %s19
      %p191 = scmp.lt.s32.totalorder %s18, 1
      %s192 = scalar_select %p191, %s18, 1
      %p193 = scmp.lt.s32.totalorder %s190, 1
      %s194 = scalar_select %p193, %s190, 1
      %s195 = smul.addr %s192, 2
      %s196 = sadd.s32 %s194, %s195
      %s197 = smul.addr %s196, 8
      %s198 = scalar_lea.vmem %s0, %s197
      %s199 = smul.u32 2, %s19
      %s200 = smul.u32 2, %s19
      %p201 = scmp.lt.s32.totalorder %s18, 1
      %s202 = scalar_select %p201, %s18, 1
      %p203 = scmp.lt.s32.totalorder %s200, 1
      %s204 = scalar_select %p203, %s200, 1
      %s205 = smul.addr %s202, 2
      %s206 = sadd.s32 %s204, %s205
      %s207 = smul.addr %s206, 8
      %s208 = scalar_lea.vmem %s3, %s207
      %s209 = smul.u32 2, %s19
      %v210 = vld [vmem:[%s198] sm:$0xff]
      %v211 = vld [vmem:[%s198 + $0x8] sm:$0xff]
      %v212 = vld [vmem:[%s1] sm:$0xff]
      %214 = vset.pattern.permute.xlu0 0
      %215 = vperm.xlu0 %214, %v212
      %v216 = vpop.permute.xlu0 %215
      %v218 = vmul.f32 %v210, %v216
      %v219 = vmul.f32 %v211, %v216
      %v220 = vld [vmem:[%s2] sm:$0xff]
      %222 = vset.pattern.permute.xlu0 0
      %223 = vperm.xlu0 %222, %v220
      %v224 = vpop.permute.xlu0 %223
      %v226 = vadd.f32 %v218, %v224
      %v227 = vadd.f32 %v219, %v224
      %v228 = vmax.f32 %v226, 0.0
      %v229 = vmax.f32 %v227, 0.0
      %230 = vst [vmem:[%s208] sm:$0xff] %v228
      %231 = vst [vmem:[%s208 + $0x8] sm:$0xff] %v229
      %s232 = smul.u32 2, %s19
      %p233 = scmp.lt.s32.totalorder %s18, 1
      %s234 = scalar_select %p233, %s18, 1
      %p235 = scmp.lt.s32.totalorder %s232, 1
      %s236 = scalar_select %p235, %s232, 1
      %s237 = smul.addr %s234, 2
      %s238 = sadd.s32 %s236, %s237
      %s239 = smul.addr %s238, 8
      %s240 = scalar_lea.vmem %s3, %s239
      // Predicated region
      $region33: #{conv2d_norm_act.3} parent=31 // pred_check
        %p241 = pneg %p116
      $region34: #{conv2d_norm_act.3} parent=31 // pred_check_branch
        %243 = sbr.rel (%p241) target = $region36
      $region35: #{conv2d_norm_act.3} parent=31 // pred_region
        %s244 = smul.u32 2, %s19
      $region36: #{conv2d_norm_act.3} parent=31 // pred_fallthru
        _
    $region32: #{conv2d_norm_act.3} parent=5 // pred_fallthru
      _
    %p245 = scmp.le.s32.totalorder 2, %s9
    // Predicated region
    $region37: #{conv2d_norm_act.3} parent=5 // pred_check
      %p246 = pneg %p245
    $region38: #{conv2d_norm_act.3} parent=5 // pred_check_branch
      %248 = sbr.rel (%p246) target = $region40
    $region39: #{conv2d_norm_act.3} parent=5 // pred_region
      %s249 = ssub.s32 %s9, 2
      // Predicated region
      $region41: #{conv2d_norm_act.3} parent=39 // pred_check
        %p250 = pneg %p122
      $region42: #{conv2d_norm_act.3} parent=39 // pred_check_branch
        %252 = sbr.rel (%p250) target = $region44
      $region43: #{conv2d_norm_act.3} parent=39 // pred_region
        %s253 = smul.u32 2, %s21
        %p254 = scmp.lt.s32.totalorder %s20, 1
        %s255 = scalar_select %p254, %s20, 1
        %p256 = scmp.lt.s32.totalorder %s253, 1
        %s257 = scalar_select %p256, %s253, 1
        %s258 = smul.addr %s255, 2
        %s259 = sadd.s32 %s257, %s258
        %s260 = smul.addr %s259, 8
        %s261 = scalar_lea.vmem %s3, %s260
      $region44: #{conv2d_norm_act.3} parent=39 // pred_fallthru
        _
    $region40: #{conv2d_norm_act.3} parent=5 // pred_fallthru
      _
  $region6: #{conv2d_norm_act.3} parent=0 // loop_footer
    %s13 = sadd.s32 1, %s9
  $region7: #{conv2d_norm_act.3} parent=0 // loop_footer_branch
    %8 = sbr.rel target = $region3
  $region8: #{conv2d_norm_act.3} parent=0 // loop_exit
    _

// kernel: conv2d_norm_act.2
$region0: #{conv2d_norm_act.2}
  #allocation0 [shape = 'u32[]', space=smem, size = 0x4, offset = 0x4, fixed_abs, tag = 'smem constant byte address 0x4 - core index']
  #allocation1 [shape = 'u32[144,128]{1,0:T(1,128)}', space=vmem, size = 0x12000, scoped, tag = 'internal scratch']
  %s0 = inlined_call_operand.vmem [shape: bf16[2,36,256], index: 0, kind: input, shape index: {}]
  %s1 = inlined_call_operand.vmem [shape: bf16[8,36], index: 1, kind: input, shape index: {}]
  %s2 = inlined_call_operand.vmem [shape: f32[2,8,256], index: 2, kind: output, shape index: {0}]
  %s3 = inlined_call_operand.vmem [shape: f32[2,1,8,1], index: 3, kind: output, shape index: {1}]
  %s4 = inlined_call_operand.vmem [shape: f32[2,1,8,1], index: 4, kind: output, shape index: {2}]
  %5 = xla_tuple %s2, %s3, %s4
  %s6 = sld [smem:[#allocation0]]
  $region57: #{conv2d_norm_act.2} parent=0
    _
  %s8 = ssub.s32 1, %s6
  %s9 = scalar_select 0, %s8, %s6
  loop: start=0, step=1, limit=4
  $region2: #{conv2d_norm_act.2} parent=0 // loop_pre_header
    _
  $region3: #{conv2d_norm_act.2} parent=0 // loop_header
    %s11 = sphi 0, %s15
    %p12 = scmp.ge.s32.totalorder %s11, 4
    %s18 = sphi 0, %s30
    %s19 = sphi 0, %s26
    %s20 = sphi 0, %s18
    %s21 = sphi 0, %s19
    %s22 = sphi 0, %s20
    %s23 = sphi 0, %s21
    %s35 = sphi 0, %s37
    %s38 = sphi 0, %s35
    %s39 = sphi 0, %s38
    %s55 = sphi 0, %s39
    %s59 = sphi 0, %s59
    %s61 = sphi 0, %s59
    %s62 = sphi 0, %s61
    %s76 = sphi 0, %s62
    %s84 = sphi 0, %s86
    %s87 = sphi 0, %s84
    %s88 = sphi 0, %s87
    %s104 = sphi 0, %s88
    %s112 = sphi 0, %s114
    %s115 = sphi 0, %s112
    %s116 = sphi 0, %s115
    %s132 = sphi 0, %s116
    %s140 = sphi 0, %s142
    %s143 = sphi 0, %s140
    %s144 = sphi 0, %s143
    %s160 = sphi 0, %s144
  $region4: #{conv2d_norm_act.2} parent=0 // loop_header_branch
    %14 = sbr.rel (%p12) target = $region8
  $region5: #{conv2d_norm_act.2} parent=0 // loop_body
    %s16 = ssub.s32 %s11, 1
    %s17 = ssub.s32 %s11, 2
    %s24 = sadd.s32 1, %s19
    %p25 = scmp.ge.s32.totalorder %s24, 1
    %s26 = scalar_select %p25, 0, %s24
    %s27 = sadd.s32 1, %s18
    %s28 = scalar_select %p25, %s27, %s18
    %p29 = scmp.ge.s32.totalorder %s28, 2
    %s30 = scalar_select %p29, 0, %s28
    %s31 = ssub.s32 %s18, %s30
    %s32 = ssub.s32 %s19, %s26
    %s33 = sor.u32 %s31, %s32
    %p34 = scmp.eq.s32.totalorder %s33, 0
    %s36 = sadd.s32 %s35, 1
    %s37 = scalar_select %p34, %s35, %s36
    %p40 = pneg %p34
    %p41 = scmp.eq.s32.totalorder %s11, 1
    %p42 = por %p40, %p41
    %p43 = scmp.ne.s32.totalorder %s35, %s38
    %p44 = scmp.eq.s32.totalorder %s11, 0
    %p45 = por %p43, %p44
    %p46 = scmp.ne.s32.totalorder %s35, %s38
    %p47 = scmp.eq.s32.totalorder %s16, 1
    %p48 = por %p46, %p47
    %p49 = scmp.ne.s32.totalorder %s38, %s39
    %p50 = scmp.eq.s32.totalorder %s16, 0
    %p51 = por %p49, %p50
    %p52 = scmp.ne.s32.totalorder %s38, %s39
    %p53 = scmp.eq.s32.totalorder %s17, 1
    %p54 = por %p52, %p53
    %p56 = scmp.ne.s32.totalorder %s39, %s55
    %p57 = scmp.eq.s32.totalorder %s17, 0
    %p58 = por %p56, %p57
    %s60 = sadd.s32 %s59, 1
    %p63 = scmp.eq.s32.totalorder %s11, 1
    %p64 = scmp.ne.s32.totalorder %s59, %s61
    %p65 = scmp.eq.s32.totalorder %s11, 0
    %p66 = por %p64, %p65
    %p67 = scmp.ne.s32.totalorder %s59, %s61
    %p68 = scmp.eq.s32.totalorder %s16, 1
    %p69 = por %p67, %p68
    %p70 = scmp.ne.s32.totalorder %s61, %s62
    %p71 = scmp.eq.s32.totalorder %s16, 0
    %p72 = por %p70, %p71
    %p73 = scmp.ne.s32.totalorder %s61, %s62
    %p74 = scmp.eq.s32.totalorder %s17, 1
    %p75 = por %p73, %p74
    %p77 = scmp.ne.s32.totalorder %s62, %s76
    %p78 = scmp.eq.s32.totalorder %s17, 0
    %p79 = por %p77, %p78
    %s80 = ssub.s32 %s18, %s30
    %s81 = ssub.s32 %s19, %s26
    %s82 = sor.u32 %s80, %s81
    %p83 = scmp.eq.s32.totalorder %s82, 0
    %s85 = sadd.s32 %s84, 1
    %s86 = scalar_select %p83, %s84, %s85
    %p89 = pneg %p83
    %p90 = scmp.eq.s32.totalorder %s11, 1
    %p91 = por %p89, %p90
    %p92 = scmp.ne.s32.totalorder %s84, %s87
    %p93 = scmp.eq.s32.totalorder %s11, 0
    %p94 = por %p92, %p93
    %p95 = scmp.ne.s32.totalorder %s84, %s87
    %p96 = scmp.eq.s32.totalorder %s16, 1
    %p97 = por %p95, %p96
    %p98 = scmp.ne.s32.totalorder %s87, %s88
    %p99 = scmp.eq.s32.totalorder %s16, 0
    %p100 = por %p98, %p99
    %p101 = scmp.ne.s32.totalorder %s87, %s88
    %p102 = scmp.eq.s32.totalorder %s17, 1
    %p103 = por %p101, %p102
    %p105 = scmp.ne.s32.totalorder %s88, %s104
    %p106 = scmp.eq.s32.totalorder %s17, 0
    %p107 = por %p105, %p106
    %s108 = ssub.s32 %s18, %s30
    %s109 = ssub.s32 %s19, %s26
    %s110 = sor.u32 %s108, %s109
    %p111 = scmp.eq.s32.totalorder %s110, 0
    %s113 = sadd.s32 %s112, 1
    %s114 = scalar_select %p111, %s112, %s113
    %p117 = pneg %p111
    %p118 = scmp.eq.s32.totalorder %s11, 1
    %p119 = por %p117, %p118
    %p120 = scmp.ne.s32.totalorder %s112, %s115
    %p121 = scmp.eq.s32.totalorder %s11, 0
    %p122 = por %p120, %p121
    %p123 = scmp.ne.s32.totalorder %s112, %s115
    %p124 = scmp.eq.s32.totalorder %s16, 1
    %p125 = por %p123, %p124
    %p126 = scmp.ne.s32.totalorder %s115, %s116
    %p127 = scmp.eq.s32.totalorder %s16, 0
    %p128 = por %p126, %p127
    %p129 = scmp.ne.s32.totalorder %s115, %s116
    %p130 = scmp.eq.s32.totalorder %s17, 1
    %p131 = por %p129, %p130
    %p133 = scmp.ne.s32.totalorder %s116, %s132
    %p134 = scmp.eq.s32.totalorder %s17, 0
    %p135 = por %p133, %p134
    %s136 = ssub.s32 %s18, %s30
    %s137 = ssub.s32 %s19, %s26
    %s138 = sor.u32 %s136, %s137
    %p139 = scmp.eq.s32.totalorder %s138, 0
    %s141 = sadd.s32 %s140, 1
    %s142 = scalar_select %p139, %s140, %s141
    %p145 = pneg %p139
    %p146 = scmp.eq.s32.totalorder %s11, 1
    %p147 = por %p145, %p146
    %p148 = scmp.ne.s32.totalorder %s140, %s143
    %p149 = scmp.eq.s32.totalorder %s11, 0
    %p150 = por %p148, %p149
    %p151 = scmp.ne.s32.totalorder %s140, %s143
    %p152 = scmp.eq.s32.totalorder %s16, 1
    %p153 = por %p151, %p152
    %p154 = scmp.ne.s32.totalorder %s143, %s144
    %p155 = scmp.eq.s32.totalorder %s16, 0
    %p156 = por %p154, %p155
    %p157 = scmp.ne.s32.totalorder %s143, %s144
    %p158 = scmp.eq.s32.totalorder %s17, 1
    %p159 = por %p157, %p158
    %p161 = scmp.ne.s32.totalorder %s144, %s160
    %p162 = scmp.eq.s32.totalorder %s17, 0
    %p163 = por %p161, %p162
    %p164 = scmp.le.s32.totalorder 1, %s11
    %p165 = scmp.lt.s32.totalorder %s11, 3
    %p166 = pnand %p164, %p165
    %p167 = pneg %p166
    // Predicated region
    $region9: #{conv2d_norm_act.2} parent=5 // pred_check
      _
    $region10: #{conv2d_norm_act.2} parent=5 // pred_check_branch
      %169 = sbr.rel (%p166) target = $region12
    $region11: #{conv2d_norm_act.2} parent=5 // pred_region
      %s170 = ssub.s32 %s11, 1
      // Predicated region
      $region13: #{conv2d_norm_act.2} parent=11 // pred_check
        %p171 = pneg %p72
      $region14: #{conv2d_norm_act.2} parent=11 // pred_check_branch
        %173 = sbr.rel (%p171) target = $region16
      $region15: #{conv2d_norm_act.2} parent=11 // pred_region
        _
      $region16: #{conv2d_norm_act.2} parent=11 // pred_fallthru
        _
    $region12: #{conv2d_norm_act.2} parent=5 // pred_fallthru
      _
    %p174 = scmp.lt.s32.totalorder %s11, 2
    // Predicated region
    $region17: #{conv2d_norm_act.2} parent=5 // pred_check
      %p175 = pneg %p174
    $region18: #{conv2d_norm_act.2} parent=5 // pred_check_branch
      %177 = sbr.rel (%p175) target = $region20
    $region19: #{conv2d_norm_act.2} parent=5 // pred_region
      // Predicated region
      $region21: #{conv2d_norm_act.2} parent=19 // pred_check
        %p178 = pneg %p45
      $region22: #{conv2d_norm_act.2} parent=19 // pred_check_branch
        %180 = sbr.rel (%p178) target = $region24
      $region23: #{conv2d_norm_act.2} parent=19 // pred_region
        %s181 = smul.u32 2, %s19
        %p182 = scmp.lt.s32.totalorder %s18, 1
        %s183 = scalar_select %p182, %s18, 1
        %p184 = scmp.lt.s32.totalorder %s181, 1
        %s185 = scalar_select %p184, %s181, 1
        %s186 = smul.addr %s183, 10
        %s187 = sadd.s32 %s185, %s186
        %s188 = smul.addr %s187, 4
        %s189 = scalar_lea.vmem %s0, %s188
        %s190 = smul.u32 2, %s19
      $region24: #{conv2d_norm_act.2} parent=19 // pred_fallthru
        _
    $region20: #{conv2d_norm_act.2} parent=5 // pred_fallthru
      _
    %p191 = scmp.le.s32.totalorder 1, %s11
    %p192 = scmp.lt.s32.totalorder %s11, 3
    %p193 = pnand %p191, %p192
    %p194 = pneg %p193
    // Predicated region
    $region25: #{conv2d_norm_act.2} parent=5 // pred_check
      _
    $region26: #{conv2d_norm_act.2} parent=5 // pred_check_branch
      %196 = sbr.rel (%p193) target = $region28
    $region27: #{conv2d_norm_act.2} parent=5 // pred_region
      %s197 = ssub.s32 %s11, 1
      %s198 = smul.u32 2, %s21
      %p199 = scmp.lt.s32.totalorder %s20, 1
      %s200 = scalar_select %p199, %s20, 1
      %p201 = scmp.lt.s32.totalorder %s198, 1
      %s202 = scalar_select %p201, %s198, 1
      %s203 = smul.addr %s200, 10
      %s204 = sadd.s32 %s202, %s203
      %s205 = smul.addr %s204, 4
      %s206 = scalar_lea.vmem %s0, %s205
      %p207 = pneg %p51
      %p208 = pneg %p48
      %p209 = pneg %p72
      %p210 = pneg %p69
      %p211 = pneg %p100
      %p212 = pneg %p97
      %s213 = smul.u32 2, %s21
      %p214 = scmp.lt.s32.totalorder %s20, 1
      %s215 = scalar_select %p214, %s20, 1
      %p216 = scmp.lt.s32.totalorder %s213, 1
      %s217 = scalar_select %p216, %s213, 1
      %s218 = smul.addr %s215, 2
      %s219 = sadd.s32 %s217, %s218
      %s220 = smul.addr %s219, 8
      %s221 = scalar_lea.vmem %s2, %s220
      %p222 = pneg %p128
      %p223 = pneg %p125
      %p224 = scmp.lt.s32.totalorder %s20, 1
      %s225 = scalar_select %p224, %s20, 1
      %p226 = scmp.lt.s32.totalorder %s21, 0
      %s227 = scalar_select %p226, %s21, 0
      %s228 = sadd.s32 %s227, %s225
      %s229 = smul.addr %s228, 8
      %s230 = scalar_lea.vmem %s3, %s229
      %p231 = pneg %p156
      %p232 = pneg %p153
      %p233 = scmp.lt.s32.totalorder %s20, 1
      %s234 = scalar_select %p233, %s20, 1
      %p235 = scmp.lt.s32.totalorder %s21, 0
      %s236 = scalar_select %p235, %s21, 0
      %s237 = sadd.s32 %s236, %s234
      %s238 = smul.addr %s237, 8
      %s239 = scalar_lea.vmem %s4, %s238
      %s240 = smul.u32 2, %s21
      %p241 = scmp.lt.s32.totalorder %s20, 1
      %s242 = scalar_select %p241, %s20, 1
      %p243 = scmp.lt.s32.totalorder %s240, 1
      %s244 = scalar_select %p243, %s240, 1
      %s245 = smul.addr %s242, 10
      %s246 = sadd.s32 %s244, %s245
      %s247 = smul.addr %s246, 4
      %s248 = scalar_lea.vmem %s0, %s247
      %s249 = smul.u32 2, %s21
      %s250 = smul.u32 2, %s21
      %p251 = scmp.lt.s32.totalorder %s20, 1
      %s252 = scalar_select %p251, %s20, 1
      %p253 = scmp.lt.s32.totalorder %s250, 1
      %s254 = scalar_select %p253, %s250, 1
      %s255 = smul.addr %s252, 2
      %s256 = sadd.s32 %s254, %s255
      %s257 = smul.addr %s256, 8
      %s258 = scalar_lea.vmem %s2, %s257
      %s259 = smul.u32 2, %s21
      %p260 = scmp.lt.s32.totalorder %s20, 1
      %s261 = scalar_select %p260, %s20, 1
      %p262 = scmp.lt.s32.totalorder %s21, 0
      %s263 = scalar_select %p262, %s21, 0
      %s264 = sadd.s32 %s263, %s261
      %s265 = smul.addr %s264, 8
      %s266 = scalar_lea.vmem %s3, %s265
      %p267 = scmp.lt.s32.totalorder %s20, 1
      %s268 = scalar_select %p267, %s20, 1
      %p269 = scmp.lt.s32.totalorder %s21, 0
      %s270 = scalar_select %p269, %s21, 0
      %s271 = sadd.s32 %s270, %s268
      %s272 = smul.addr %s271, 8
      %s273 = scalar_lea.vmem %s4, %s272
      %v275 = vld [vmem:[%s1] sm:$0xf]
      %v276 = vld [vmem:[%s248] sm:$0xff]
      %v277 = vld [vmem:[%s248 + $0x8] sm:$0xff]
      %v278 = vld [vmem:[%s248 + $0x10] sm:$0xff]
      %v279 = vld [vmem:[%s248 + $0x18] sm:$0xff]
      %v280 = vld [vmem:[%s248 + $0x20] sm:$0x33]
      %v286 = vunpack.c.l.b16 %v276
      %v287 = vunpack.c.h.b16 %v276
      %v288 = vunpack.c.l.b16 %v277
      %v289 = vunpack.c.h.b16 %v277
      %v290 = vunpack.c.l.b16 %v278
      %v291 = vunpack.c.h.b16 %v278
      %v292 = vunpack.c.l.b16 %v279
      %v293 = vunpack.c.h.b16 %v279
      %v294 = vunpack.c.l.b16 %v280
      %v295 = vunpack.c.h.b16 %v280
      %v296 = vpack.c.b16 %v288, %v286
      %v297 = vpack.c.b16 %v289, %v287
      %v298 = vpack.c.b16 %v292, %v290
      %v299 = vpack.c.b16 %v293, %v291
      %v300 = vpack.c.b16 %v294, %v294
      %v301 = vpack.c.b16 %v295, %v295
      %vm306 = vcmask 293888
      %v308 = vsel %vm306, %v275, 0
      %vm310 = vcmask 1041408
      %v312 = vsel %vm310, %v300, 0
      %v315 = vsel %vm310, %v301, 0
      %317 = vmatprep.subr.bf16.mxu0 %v297
      %318 = vmatpush1.bf16.msra.mxu0 %v296
      %319 = vmatprep.subr.bf16.mxu0 %v299
      %320 = vmatpush1.bf16.msra.mxu0 %v298
      %321 = vmatprep.subr.bf16.mxu0 %v315
      %322 = vmatpush1.bf16.msra.mxu0 %v312
      %323 = vmatprep.subr.bf16.mxu0 0
      %324 = vmatpush1.bf16.msra.mxu0 0
      %325 = vmatprep.subr.bf16.mxu0 0
      %326 = vmatpush1.bf16.msra.mxu0 0
      %327 = vmatprep.subr.bf16.mxu0 0
      %328 = vmatpush1.bf16.msra.mxu0 0
      %329 = vmatprep.subr.bf16.mxu0 0
      %330 = vmatpush1.bf16.msra.mxu0 0
      %331 = vmatprep.subr.bf16.mxu0 0
      %332 = vmatpush1.bf16.msra.mxu0 0
      %333 = vmatprep.subr.bf16.mxu0 0
      %334 = vmatpush1.bf16.msra.mxu0 0
      %335 = vmatprep.subr.bf16.mxu0 0
      %336 = vmatpush1.bf16.msra.mxu0 0
      %337 = vmatprep.subr.bf16.mxu0 0
      %338 = vmatpush1.bf16.msra.mxu0 0
      %339 = vmatprep.subr.bf16.mxu0 0
      %340 = vmatpush1.bf16.msra.mxu0 0
      %341 = vmatprep.subr.bf16.mxu0 0
      %342 = vmatpush1.bf16.msra.mxu0 0
      %343 = vmatprep.subr.bf16.mxu0 0
      %344 = vmatpush1.bf16.msra.mxu0 0
      %345 = vmatprep.subr.bf16.mxu0 0
      %346 = vmatpush1.bf16.msra.mxu0 0
      %347 = vmatprep.subr.bf16.mxu0 0
      %348 = vmatpush1.bf16.msra.mxu0 0
      %349 = vmatprep.mubr.bf16.mxu0 0
      %350 = vmatmul.mubr.bf16.gmra.mrb[0].mxu0 %v308
      %v351 = vpop.f32.mrb[0].mxu0
      %v352 = vadd.f32 0.0, %v351
      %v353 = vpop.f32.mrb[0].mxu0
      %v354 = vadd.f32 0.0, %v353
      %v355 = vpop.f32.mrb[0].mxu0
      %v356 = vpop.f32.mrb[0].mxu0
      %357 = vdwg.mxu0
      %358 = vst [vmem:[%s258] sm:$0xff] %v352
      %359 = vst [vmem:[%s258 + $0x8] sm:$0xff] %v354
      %v360 = vadd.f32 %v352, %v354
      %361 = vadd.xlane.f32.xlu0 %v360
      %v362 = vpop.xlane.xlu0 %361
      %vm363 = vcmask 7168
      %364 = vst.msk [vmem:[%s266] sm:$0xff] %vm363, %v362
      %v365 = vmul.f32 %v352, %v352
      %v366 = vmul.f32 %v354, %v354
      %v367 = vadd.f32 %v365, %v366
      %368 = vadd.xlane.f32.xlu0 %v367
      %v369 = vpop.xlane.xlu0 %368
      %370 = vst.msk [vmem:[%s273] sm:$0xff] %vm363, %v369
      %s371 = smul.u32 2, %s21
      %p372 = scmp.lt.s32.totalorder %s20, 1
      %s373 = scalar_select %p372, %s20, 1
      %p374 = scmp.lt.s32.totalorder %s371, 1
      %s375 = scalar_select %p374, %s371, 1
      %s376 = smul.addr %s373, 2
      %s377 = sadd.s32 %s375, %s376
      %s378 = smul.addr %s377, 8
      %s379 = scalar_lea.vmem %s2, %s378
      %p380 = scmp.lt.s32.totalorder %s20, 1
      %s381 = scalar_select %p380, %s20, 1
      %p382 = scmp.lt.s32.totalorder %s21, 0
      %s383 = scalar_select %p382, %s21, 0
      %s384 = sadd.s32 %s383, %s381
      %s385 = smul.addr %s384, 8
      %s386 = scalar_lea.vmem %s3, %s385
      %p387 = scmp.lt.s32.totalorder %s20, 1
      %s388 = scalar_select %p387, %s20, 1
      %p389 = scmp.lt.s32.totalorder %s21, 0
      %s390 = scalar_select %p389, %s21, 0
      %s391 = sadd.s32 %s390, %s388
      %s392 = smul.addr %s391, 8
      %s393 = scalar_lea.vmem %s4, %s392
      // Predicated region
      $region29: #{conv2d_norm_act.2} parent=27 // pred_check
        %p394 = pneg %p97
      $region30: #{conv2d_norm_act.2} parent=27 // pred_check_branch
        %396 = sbr.rel (%p394) target = $region32
      $region31: #{conv2d_norm_act.2} parent=27 // pred_region
        %s397 = smul.u32 2, %s21
      $region32: #{conv2d_norm_act.2} parent=27 // pred_fallthru
        _
      // Predicated region
      $region33: #{conv2d_norm_act.2} parent=27 // pred_check
        %p398 = pneg %p125
      $region34: #{conv2d_norm_act.2} parent=27 // pred_check_branch
        %400 = sbr.rel (%p398) target = $region36
      $region35: #{conv2d_norm_act.2} parent=27 // pred_region
        _
      $region36: #{conv2d_norm_act.2} parent=27 // pred_fallthru
        _
      // Predicated region
      $region37: #{conv2d_norm_act.2} parent=27 // pred_check
        %p401 = pneg %p153
      $region38: #{conv2d_norm_act.2} parent=27 // pred_check_branch
        %403 = sbr.rel (%p401) target = $region40
      $region39: #{conv2d_norm_act.2} parent=27 // pred_region
        _
      $region40: #{conv2d_norm_act.2} parent=27 // pred_fallthru
        _
    $region28: #{conv2d_norm_act.2} parent=5 // pred_fallthru
      _
    %p404 = scmp.le.s32.totalorder 2, %s11
    // Predicated region
    $region41: #{conv2d_norm_act.2} parent=5 // pred_check
      %p405 = pneg %p404
    $region42: #{conv2d_norm_act.2} parent=5 // pred_check_branch
      %407 = sbr.rel (%p405) target = $region44
    $region43: #{conv2d_norm_act.2} parent=5 // pred_region
      %s408 = ssub.s32 %s11, 2
      // Predicated region
      $region45: #{conv2d_norm_act.2} parent=43 // pred_check
        %p409 = pneg %p103
      $region46: #{conv2d_norm_act.2} parent=43 // pred_check_branch
        %411 = sbr.rel (%p409) target = $region48
      $region47: #{conv2d_norm_act.2} parent=43 // pred_region
        %s412 = smul.u32 2, %s23
        %p413 = scmp.lt.s32.totalorder %s22, 1
        %s414 = scalar_select %p413, %s22, 1
        %p415 = scmp.lt.s32.totalorder %s412, 1
        %s416 = scalar_select %p415, %s412, 1
        %s417 = smul.addr %s414, 2
        %s418 = sadd.s32 %s416, %s417
        %s419 = smul.addr %s418, 8
        %s420 = scalar_lea.vmem %s2, %s419
      $region48: #{conv2d_norm_act.2} parent=43 // pred_fallthru
        _
      // Predicated region
      $region49: #{conv2d_norm_act.2} parent=43 // pred_check
        %p421 = pneg %p131
      $region50: #{conv2d_norm_act.2} parent=43 // pred_check_branch
        %423 = sbr.rel (%p421) target = $region52
      $region51: #{conv2d_norm_act.2} parent=43 // pred_region
        %p424 = scmp.lt.s32.totalorder %s22, 1
        %s425 = scalar_select %p424, %s22, 1
        %p426 = scmp.lt.s32.totalorder %s23, 0
        %s427 = scalar_select %p426, %s23, 0
        %s428 = sadd.s32 %s427, %s425
        %s429 = smul.addr %s428, 8
        %s430 = scalar_lea.vmem %s3, %s429
      $region52: #{conv2d_norm_act.2} parent=43 // pred_fallthru
        _
      // Predicated region
      $region53: #{conv2d_norm_act.2} parent=43 // pred_check
        %p431 = pneg %p159
      $region54: #{conv2d_norm_act.2} parent=43 // pred_check_branch
        %433 = sbr.rel (%p431) target = $region56
      $region55: #{conv2d_norm_act.2} parent=43 // pred_region
        %p434 = scmp.lt.s32.totalorder %s22, 1
        %s435 = scalar_select %p434, %s22, 1
        %p436 = scmp.lt.s32.totalorder %s23, 0
        %s437 = scalar_select %p436, %s23, 0
        %s438 = sadd.s32 %s437, %s435
        %s439 = smul.addr %s438, 8
        %s440 = scalar_lea.vmem %s4, %s439
      $region56: #{conv2d_norm_act.2} parent=43 // pred_fallthru
        _
    $region44: #{conv2d_norm_act.2} parent=5 // pred_fallthru
      _
  $region6: #{conv2d_norm_act.2} parent=0 // loop_footer
    %s15 = sadd.s32 1, %s11
  $region7: #{conv2d_norm_act.2} parent=0 // loop_footer_branch
    %10 = sbr.rel target = $region3
  $region8: #{conv2d_norm_act.2} parent=0 // loop_exit
    _

</llo_original>
